<compile_context>
chip_gen: v7x
topology: tpu7x:2x2x1
jax: 0.10.0
libtpu: 0.0.40
codegen_flags: <defaults>
</compile_context>

<pallas_src>
import jax
import jax.numpy as jnp
from jax import lax
from jax.experimental import pallas as pl
from jax.experimental.pallas import tpu as pltpu

H1, H2 = 64, 32  # hidden widths of the discriminator


def _disc_kernel(x_ref, w1_ref, b1_ref, w2_ref, b2_ref, w3_ref, b3_ref, o_ref):
    """One batch tile, computed feature-major (batch on the lane axis).

    x_ref  : (TILE_B, D)  f32    streamed input tile, natural layout
    w1_ref : (64, D)      bf16   PyTorch nn.Linear.weight layout (out, in)
    w2_ref : (32, 64)     bf16
    w3_ref : (32, 1)      f32
    b*_ref : column vectors, f32
    o_ref  : (1, TILE_B)  f32    lane-dense sigmoid outputs
    """
    # In-kernel bf16 cast (keeps the HBM stream at 4 B/elem, halves MXU operand width).
    x = x_ref[...].astype(jnp.bfloat16)

    # Layer 1: contract the feature axis of both operands -> (64, TILE_B).
    # Batch ends up on the lane axis with no wrapper-side transpose.
    h1 = lax.dot_general(
        w1_ref[...], x,
        dimension_numbers=(((1,), (1,)), ((), ())),
        preferred_element_type=jnp.float32,
    )
    h1 = jnp.maximum(h1 + b1_ref[...], 0.0)

    # Layer 2: (32, 64) @ (64, TILE_B) -> (32, TILE_B), f32 accumulate.
    h2 = jnp.dot(w2_ref[...], h1.astype(jnp.bfloat16),
                 preferred_element_type=jnp.float32)
    h2 = jnp.maximum(h2 + b2_ref[...], 0.0)

    # Layer 3 (out_features == 1): VPU multiply + sublane reduction instead of
    # an N=1 MXU matmul; result is a naturally lane-dense (1, TILE_B) row.
    logits = jnp.sum(h2 * w3_ref[...], axis=0, keepdims=True) + b3_ref[...]

    # Sigmoid; reciprocal rides the EUP slot (approx => ~1e-3 rel error).
    o_ref[...] = pl.reciprocal(1.0 + jnp.exp(-logits), approx=True).astype(o_ref.dtype)


def _round_up(n, m):
    return ((n + m - 1) // m) * m


def _sublane_mult(itemsize):
    return 8 * (4 // itemsize)  # 8 sublanes for f32, 16 for bf16


def _block_vmem_bytes(rows, cols, itemsize):
    """(8,128)-tile-padded VMEM footprint of one block."""
    return _round_up(rows, _sublane_mult(itemsize)) * _round_up(cols, 128) * itemsize


def _choose_tiling(B, D, x_itemsize):
    """Pick TILE_B (the lane / N dimension of every matmul) and the grid size.

    Targets ~2 MiB per streamed x tile (amortizes ~0.35 us/step grid overhead),
    within [512, 8192] lanes where possible, capped so the double-buffered x
    stream + f32 intermediates stay <= ~20 MiB of VMEM (safe under v7x's 64 MiB
    physical / 32 MiB default scoped limit), and capped near B/2 so >= 2 grid
    steps exist for large batches (lets v7x's two TensorCores both get work).
    """
    target_rows = (2 * 1024 * 1024) // max(1, D * x_itemsize)
    tile_b = min(8192, max(512, _round_up(max(target_rows, 1), 128)))

    # VMEM cap: 2 x-buffers + f32 intermediates per row.
    per_row_bytes = 2 * D * x_itemsize + (H1 + H2 + 8) * 4
    vmem_rows = max(128, ((20 * 1024 * 1024) // per_row_bytes) // 128 * 128)
    tile_b = min(tile_b, vmem_rows)

    # Don't exceed the batch; keep >= 2 grid steps when the batch allows it.
    tile_b = min(tile_b, max(128, _round_up(B, 128)))
    if B >= 256:
        tile_b = min(tile_b, max(128, _round_up(pl.cdiv(B, 2), 128)))

    return tile_b, pl.cdiv(B, tile_b)


def _dimension_semantics(num_tiles):
    """Explicit 2-TensorCore sharding on v7x; plain 'parallel' elsewhere."""
    try:
        kind = jax.devices()[0].device_kind.lower()
    except Exception:  # pragma: no cover - defensive
        kind = ""
    is_v7 = ("v7" in kind) or ("tpu7" in kind)
    if is_v7 and num_tiles >= 2 and num_tiles % 2 == 0:
        return (pltpu.CORE_PARALLEL,)  # only core_parallel actually splits cores
    return ("parallel",)


def discriminator_forward(x, params):
    """x: (B, D) float32. params: PyTorch-layout dict (see init_params). Returns (B, 1) f32."""
    B, D = x.shape
    x_itemsize = x.dtype.itemsize
    tile_b, num_tiles = _choose_tiling(B, D, x_itemsize)

    # Weights/biases (tiny, one-time cast). bf16 matmul operands, f32 epilogue.
    w1 = params["w1"].astype(jnp.bfloat16)               # (64, D)
    w2 = params["w2"].astype(jnp.bfloat16)               # (32, 64)
    w3 = params["w3"].reshape(H2, 1).astype(jnp.float32)  # (32, 1)
    b1 = params["b1"].reshape(H1, 1).astype(jnp.float32)  # (64, 1)
    b2 = params["b2"].reshape(H2, 1).astype(jnp.float32)  # (32, 1)
    b3 = params["b3"].reshape(1, 1).astype(jnp.float32)   # (1, 1)

    # Tight VMEM budget: (8,128)-padded blocks, 2 buffers assumed everywhere
    # (even for constant-index-map operands), plus f32 intermediates.
    x_bytes = 2 * _block_vmem_bytes(tile_b, D, x_itemsize)
    out_bytes = 2 * _block_vmem_bytes(1, tile_b, 4)
    w_bytes = 2 * (_block_vmem_bytes(H1, D, 2) + _block_vmem_bytes(H2, H1, 2)
                   + _block_vmem_bytes(H1, 1, 4) + 2 * _block_vmem_bytes(H2, 1, 4)
                   + _block_vmem_bytes(1, 1, 4))
    interm_bytes = tile_b * (H1 + H2 + 8) * 4
    footprint = x_bytes + out_bytes + w_bytes + interm_bytes
    vmem_limit = int(min(32 * 1024 * 1024,
                         max(16 * 1024 * 1024, footprint * 3 // 2)))

    rows = num_tiles * tile_b
    cost = pl.CostEstimate(
        flops=2 * rows * (D * H1 + H1 * H2 + H2),
        transcendentals=2 * rows,                      # exp + reciprocal per row
        bytes_accessed=B * D * x_itemsize
        + (H1 * D + H2 * H1) * 2 + (H1 + 2 * H2 + 1) * 4
        + rows * 4,
    )

    out = pl.pallas_call(
        _disc_kernel,
        # Output allocated at the tile-rounded width so every store is a full,
        # unmasked lane-dense (1, TILE_B) slab; extra columns are sliced off.
        out_shape=jax.ShapeDtypeStruct((1, rows), jnp.float32),
        grid=(num_tiles,),
        in_specs=[
            # Streamed, pipelined x tile in natural (B, D) f32 layout; the last
            # block may be partial (no jnp.pad pass over x in the wrapper).
            # If xprof shows exposed DMA at large D on v6e, add
            # pipeline_mode=pl.Buffered(3) here.
            pl.BlockSpec((tile_b, D), lambda i: (i, 0)),
            # Weights/biases: constant block index -> VMEM-resident, no re-DMA.
            pl.BlockSpec((H1, D), lambda i: (0, 0)),
            pl.BlockSpec((H1, 1), lambda i: (0, 0)),
            pl.BlockSpec((H2, H1), lambda i: (0, 0)),
            pl.BlockSpec((H2, 1), lambda i: (0, 0)),
            pl.BlockSpec((H2, 1), lambda i: (0, 0)),
            pl.BlockSpec((1, 1), lambda i: (0, 0)),
        ],
        out_specs=pl.BlockSpec((1, tile_b), lambda i: (0, i)),
        compiler_params=pltpu.CompilerParams(
            dimension_semantics=_dimension_semantics(num_tiles),
            vmem_limit_bytes=vmem_limit,
        ),
        cost_estimate=cost,
    )(x, w1, b1, w2, b2, w3, b3)

    # Out-of-range rows of a partial last tile hold garbage (can be NaN/Inf
    # through exp); they are never consumed because of this slice -- keep it.
    return out[0, :B].reshape(B, 1)


def init_params(input_dim, key):
    """Deterministic synthetic parameters in PyTorch nn.Linear layout (out, in)."""
    k1, k2, k3, k4, k5, k6 = jax.random.split(key, 6)
    s1 = 1.0 / jnp.sqrt(jnp.float32(input_dim))
    s2 = 1.0 / jnp.sqrt(jnp.float32(H1))
    s3 = 1.0 / jnp.sqrt(jnp.float32(H2))
    return {
        "w1": jax.random.uniform(k1, (H1, input_dim), jnp.float32, -s1, s1),
        "b1": jax.random.uniform(k2, (H1,), jnp.float32, -s1, s1),
        "w2": jax.random.uniform(k3, (H2, H1), jnp.float32, -s2, s2),
        "b2": jax.random.uniform(k4, (H2,), jnp.float32, -s2, s2),
        "w3": jax.random.uniform(k5, (1, H2), jnp.float32, -s3, s3),
        "b3": jax.random.uniform(k6, (1,), jnp.float32, -s3, s3),
    }


def _reference_forward(x, p):
    """Pure-JAX f32 reference matching the PyTorch module exactly."""
    h1 = jnp.maximum(x @ p["w1"].T + p["b1"], 0.0)
    h2 = jnp.maximum(h1 @ p["w2"].T + p["b2"], 0.0)
    return jax.nn.sigmoid(h2 @ p["w3"].T + p["b3"])


if __name__ == "__main__":
    key = jax.random.PRNGKey(0)
    k_x, k_p = jax.random.split(key)

    batch, input_dim = 8, 16
    x = jax.random.normal(k_x, (batch, input_dim), dtype=jnp.float32)
    params = init_params(input_dim, k_p)

    out = jax.block_until_ready(discriminator_forward(x, params))
    ref = _reference_forward(x, params)

    assert out.shape == (batch, 1), out.shape
    assert bool(jnp.all(jnp.isfinite(out)))
    # bf16 matmul operands + approx reciprocal => compare against the f32
    # reference with a tolerance consistent with bf16 precision.
    assert float(jnp.max(jnp.abs(out - ref))) < 2e-2, "mismatch vs reference"

    print("KERNEL_OK")
</pallas_src>

<mosaic_0001>
module attributes {stable_mosaic.version = 11 : i64} {
  func.func @_disc_kernel(%arg0: i32, %arg1: memref<128x16xf32, #tpu.memory_space<vmem>>, %arg2: memref<64x16xbf16, #tpu.memory_space<vmem>>, %arg3: memref<64x1xf32, #tpu.memory_space<vmem>>, %arg4: memref<32x64xbf16, #tpu.memory_space<vmem>>, %arg5: memref<32x1xf32, #tpu.memory_space<vmem>>, %arg6: memref<32x1xf32, #tpu.memory_space<vmem>>, %arg7: memref<1x1xf32, #tpu.memory_space<vmem>>, %arg8: memref<1x128xf32, #tpu.memory_space<vmem>>) attributes {dimension_semantics = [#tpu.dimension_semantics<parallel>], iteration_bounds = array<i64: 1>, scalar_prefetch = 0 : i64, scratch_operands = 0 : i64, tpu.core_type = #tpu.core_type<tc>, window_params = [{transform_indices = @transform_0, window_bounds = array<i64: 128, 16>}, {pipeline_mode = #tpu.pipeline_mode<synchronous>, transform_indices = @transform_1, window_bounds = array<i64: 64, 16>}, {pipeline_mode = #tpu.pipeline_mode<synchronous>, transform_indices = @transform_2, window_bounds = array<i64: 64, 1>}, {pipeline_mode = #tpu.pipeline_mode<synchronous>, transform_indices = @transform_3, window_bounds = array<i64: 32, 64>}, {pipeline_mode = #tpu.pipeline_mode<synchronous>, transform_indices = @transform_4, window_bounds = array<i64: 32, 1>}, {pipeline_mode = #tpu.pipeline_mode<synchronous>, transform_indices = @transform_5, window_bounds = array<i64: 32, 1>}, {pipeline_mode = #tpu.pipeline_mode<synchronous>, transform_indices = @transform_6, window_bounds = array<i64: 1, 1>}, {transform_indices = @transform_7, window_bounds = array<i64: 1, 128>}]} {
    %c0 = arith.constant 0 : index
    %c0_0 = arith.constant 0 : index
    %0 = vector.load %arg1[%c0, %c0_0] : memref<128x16xf32, #tpu.memory_space<vmem>>, vector<128x16xf32>
    %1 = arith.truncf %0 : vector<128x16xf32> to vector<128x16xbf16>
    %c0_1 = arith.constant 0 : index
    %c0_2 = arith.constant 0 : index
    %2 = vector.load %arg2[%c0_1, %c0_2] : memref<64x16xbf16, #tpu.memory_space<vmem>>, vector<64x16xbf16>
    %cst = arith.constant dense<0.000000e+00> : vector<64x128xf32>
    %3 = tpu.matmul %2, %1, %cst {dimension_numbers = #tpu.dot_dimension_numbers<[1], [1], [0], [0], [0, 0, 1, 0], [], []>} : vector<64x16xbf16>, vector<128x16xbf16>, vector<64x128xf32> -> vector<64x128xf32>
    %c0_3 = arith.constant 0 : index
    %c0_4 = arith.constant 0 : index
    %4 = vector.load %arg3[%c0_3, %c0_4] : memref<64x1xf32, #tpu.memory_space<vmem>>, vector<64x1xf32>
    %5 = vector.broadcast %4 : vector<64x1xf32> to vector<64x128xf32>
    %6 = arith.addf %3, %5 : vector<64x128xf32>
    %cst_5 = arith.constant 0.000000e+00 : f32
    %7 = vector.broadcast %cst_5 : f32 to vector<64x128xf32>
    %8 = arith.maximumf %6, %7 : vector<64x128xf32>
    %c0_6 = arith.constant 0 : index
    %c0_7 = arith.constant 0 : index
    %9 = vector.load %arg4[%c0_6, %c0_7] : memref<32x64xbf16, #tpu.memory_space<vmem>>, vector<32x64xbf16>
    %10 = arith.truncf %8 : vector<64x128xf32> to vector<64x128xbf16>
    %cst_8 = arith.constant dense<0.000000e+00> : vector<32x128xf32>
    %11 = tpu.matmul %9, %10, %cst_8 {dimension_numbers = #tpu.dot_dimension_numbers<[1], [0], [0], [1], [0, 0, 1, 1], [], []>} : vector<32x64xbf16>, vector<64x128xbf16>, vector<32x128xf32> -> vector<32x128xf32>
    %c0_9 = arith.constant 0 : index
    %c0_10 = arith.constant 0 : index
    %12 = vector.load %arg5[%c0_9, %c0_10] : memref<32x1xf32, #tpu.memory_space<vmem>>, vector<32x1xf32>
    %13 = vector.broadcast %12 : vector<32x1xf32> to vector<32x128xf32>
    %14 = arith.addf %11, %13 : vector<32x128xf32>
    %cst_11 = arith.constant 0.000000e+00 : f32
    %15 = vector.broadcast %cst_11 : f32 to vector<32x128xf32>
    %16 = arith.maximumf %14, %15 : vector<32x128xf32>
    %c0_12 = arith.constant 0 : index
    %c0_13 = arith.constant 0 : index
    %17 = vector.load %arg6[%c0_12, %c0_13] : memref<32x1xf32, #tpu.memory_space<vmem>>, vector<32x1xf32>
    %18 = vector.broadcast %17 : vector<32x1xf32> to vector<32x128xf32>
    %19 = arith.mulf %16, %18 : vector<32x128xf32>
    %cst_14 = arith.constant dense<0.000000e+00> : vector<128xf32>
    %20 = vector.multi_reduction <add>, %19, %cst_14 [0] : vector<32x128xf32> to vector<128xf32>
    %21 = vector.shape_cast %20 : vector<128xf32> to vector<1x128xf32>
    %c0_15 = arith.constant 0 : index
    %c0_16 = arith.constant 0 : index
    %22 = vector.load %arg7[%c0_15, %c0_16] : memref<1x1xf32, #tpu.memory_space<vmem>>, vector<1x1xf32>
    %23 = vector.broadcast %22 : vector<1x1xf32> to vector<1x128xf32>
    %24 = arith.addf %21, %23 : vector<1x128xf32>
    %cst_17 = arith.constant 0.000000e+00 : f32
    %25 = vector.broadcast %cst_17 : f32 to vector<1x128xf32>
    %26 = arith.subf %25, %24 : vector<1x128xf32>
    %27 = math.exp %26 : vector<1x128xf32>
    %cst_18 = arith.constant 1.000000e+00 : f32
    %28 = vector.broadcast %cst_18 : f32 to vector<1x128xf32>
    %29 = arith.addf %28, %27 : vector<1x128xf32>
    %30 = tpu.reciprocal %29 {approx = true} : vector<1x128xf32> -> vector<1x128xf32>
    %c0_19 = arith.constant 0 : index
    %c0_20 = arith.constant 0 : index
    %31 = vector.load %arg8[%c0_19, %c0_20] : memref<1x128xf32, #tpu.memory_space<vmem>>, vector<1x128xf32>
    tpu.vector_store %arg8[%c0_19, %c0_20], %30 {strides = array<i32>} : memref<1x128xf32, #tpu.memory_space<vmem>>, vector<1x128xf32>,
    return
  }
  func.func @transform_0(%arg0: i32) -> (i32, i32) {
    %c0_i32 = arith.constant 0 : i32
    %c0_i32_0 = arith.constant 0 : i32
    return %arg0, %c0_i32 : i32, i32
  }
  func.func @transform_1(%arg0: i32) -> (i32, i32) {
    %c0_i32 = arith.constant 0 : i32
    %c0_i32_0 = arith.constant 0 : i32
    %c0_i32_1 = arith.constant 0 : i32
    return %c0_i32, %c0_i32_0 : i32, i32
  }
  func.func @transform_2(%arg0: i32) -> (i32, i32) {
    %c0_i32 = arith.constant 0 : i32
    %c0_i32_0 = arith.constant 0 : i32
    %c0_i32_1 = arith.constant 0 : i32
    return %c0_i32, %c0_i32_0 : i32, i32
  }
  func.func @transform_3(%arg0: i32) -> (i32, i32) {
    %c0_i32 = arith.constant 0 : i32
    %c0_i32_0 = arith.constant 0 : i32
    %c0_i32_1 = arith.constant 0 : i32
    return %c0_i32, %c0_i32_0 : i32, i32
  }
  func.func @transform_4(%arg0: i32) -> (i32, i32) {
    %c0_i32 = arith.constant 0 : i32
    %c0_i32_0 = arith.constant 0 : i32
    %c0_i32_1 = arith.constant 0 : i32
    return %c0_i32, %c0_i32_0 : i32, i32
  }
  func.func @transform_5(%arg0: i32) -> (i32, i32) {
    %c0_i32 = arith.constant 0 : i32
    %c0_i32_0 = arith.constant 0 : i32
    %c0_i32_1 = arith.constant 0 : i32
    return %c0_i32, %c0_i32_0 : i32, i32
  }
  func.func @transform_6(%arg0: i32) -> (i32, i32) {
    %c0_i32 = arith.constant 0 : i32
    %c0_i32_0 = arith.constant 0 : i32
    %c0_i32_1 = arith.constant 0 : i32
    return %c0_i32, %c0_i32_0 : i32, i32
  }
  func.func @transform_7(%arg0: i32) -> (i32, i32) {
    %c0_i32 = arith.constant 0 : i32
    %c0_i32_0 = arith.constant 0 : i32
    return %c0_i32, %arg0 : i32, i32
  }
}

</mosaic_0001>

<llo_original>
// kernel: tpu_custom_call.1
$region0: #{tpu_custom_call.1}
  #allocation0 [shape = 'u32[]', space=smem, size = 0x4, offset = 0x4, fixed_abs, tag = 'smem constant byte address 0x4 - core index']
  #allocation1 [shape = 'u32[144,128]{1,0:T(1,128)}', space=vmem, size = 0x12000, scoped, tag = 'internal scratch']
  #allocation2 [shape = 'f32[1,1]{1,0:T(1,128)S(1)}', space=vmem, size = 0x200, scoped, tag = 'scoped memory for tpu_custom_call.1']
  %s0 = inlined_call_operand.vmem [shape: f32[8,16], index: 0, kind: input, shape index: {}]
  %s1 = inlined_call_operand.vmem [shape: bf16[64,16], index: 1, kind: input, shape index: {}]
  %s2 = inlined_call_operand.vmem [shape: f32[64,1], index: 2, kind: input, shape index: {}]
  %s3 = inlined_call_operand.vmem [shape: bf16[32,64], index: 3, kind: input, shape index: {}]
  %s4 = inlined_call_operand.vmem [shape: f32[32,1], index: 4, kind: input, shape index: {}]
  %s5 = inlined_call_operand.vmem [shape: f32[32,1], index: 5, kind: input, shape index: {}]
  %s6 = inlined_call_operand.<no memory space> [shape: f32[1,1], index: 6, kind: input, shape index: {}]
  %s7 = inlined_call_operand.hbm [shape: f32[1,128], index: 7, kind: output, shape index: {}]
  %s8 = sld [smem:[#allocation0]]
  $region38: #{tpu_custom_call.1} parent=0
    _
  %s10 = ssub.s32 1, %s8
  %s11 = scalar_select 0, %s10, %s8
  %v12 = vstv %s6
  %13 = vst [vmem:[#allocation2] sm:$0x1] %v12
  $region1: #{tpu_custom_call.1} parent=0
    #allocation3 [shape = 'u8[512]{0}', space=vmem, size = 0x400, scoped, tag = 'output window, operand 0, single buffered']
    #allocation4 [shape = 's32[1]{0}', space=sflag, size = 0x4, scoped, tag = 'scoped memory for tpu_custom_call.1']
    %14 = vsyncpa [#allocation4], 0
    // Predicated region
    $region2: #{tpu_custom_call.1} parent=1 // pred_check
      _
    $region3: #{tpu_custom_call.1} parent=1 // pred_check_branch
      %16 = sbr.rel (0) target = $region5
    $region4: #{tpu_custom_call.1} parent=1 // pred_region
      _
    $region5: #{tpu_custom_call.1} parent=1 // pred_fallthru
      _
    // Predicated region
    $region6: #{tpu_custom_call.1} parent=1 // pred_check
      _
    $region7: #{tpu_custom_call.1} parent=1 // pred_check_branch
      %18 = sbr.rel (0) target = $region9
    $region8: #{tpu_custom_call.1} parent=1 // pred_region
      _
    $region9: #{tpu_custom_call.1} parent=1 // pred_fallthru
      _
    // Predicated region
    $region10: #{tpu_custom_call.1} parent=1 // pred_check
      _
    $region11: #{tpu_custom_call.1} parent=1 // pred_check_branch
      %20 = sbr.rel (0) target = $region13
    $region12: #{tpu_custom_call.1} parent=1 // pred_region
      _
    $region13: #{tpu_custom_call.1} parent=1 // pred_fallthru
      _
    // Predicated region
    $region14: #{tpu_custom_call.1} parent=1 // pred_check
      _
    $region15: #{tpu_custom_call.1} parent=1 // pred_check_branch
      %22 = sbr.rel (0) target = $region17
    $region16: #{tpu_custom_call.1} parent=1 // pred_region
      _
    $region17: #{tpu_custom_call.1} parent=1 // pred_fallthru
      _
    // Predicated region
    $region18: #{tpu_custom_call.1} parent=1 // pred_check
      _
    $region19: #{tpu_custom_call.1} parent=1 // pred_check_branch
      %24 = sbr.rel (0) target = $region21
    $region20: #{tpu_custom_call.1} parent=1 // pred_region
      _
    $region21: #{tpu_custom_call.1} parent=1 // pred_fallthru
      _
    // Predicated region
    $region22: #{tpu_custom_call.1} parent=1 // pred_check
      _
    $region23: #{tpu_custom_call.1} parent=1 // pred_check_branch
      %26 = sbr.rel (0) target = $region25
    $region24: #{tpu_custom_call.1} parent=1 // pred_region
      _
    $region25: #{tpu_custom_call.1} parent=1 // pred_fallthru
      _
    // Predicated region
    $region26: #{tpu_custom_call.1} parent=1 // pred_check
      _
    $region27: #{tpu_custom_call.1} parent=1 // pred_check_branch
      %28 = sbr.rel (0) target = $region29
    $region28: #{tpu_custom_call.1} parent=1 // pred_region
      _
    $region29: #{tpu_custom_call.1} parent=1 // pred_fallthru
      _
    %v30 = vld [vmem:[%s0] sm:$0xff]
    %v31 = vld [vmem:[%s0 + $0x8] sm:$0xff]
    %v32 = vld [vmem:[%s0 + $0x10] sm:$0xff]
    %v33 = vld [vmem:[%s0 + $0x18] sm:$0xff]
    %v34 = vld [vmem:[%s0 + $0x20] sm:$0xff]
    %v35 = vld [vmem:[%s0 + $0x28] sm:$0xff]
    %v36 = vld [vmem:[%s0 + $0x30] sm:$0xff]
    %v37 = vld [vmem:[%s0 + $0x38] sm:$0xff]
    %v38 = vld [vmem:[%s0 + $0x40] sm:$0xff]
    %v39 = vld [vmem:[%s0 + $0x48] sm:$0xff]
    %v40 = vld [vmem:[%s0 + $0x50] sm:$0xff]
    %v41 = vld [vmem:[%s0 + $0x58] sm:$0xff]
    %v42 = vld [vmem:[%s0 + $0x60] sm:$0xff]
    %v43 = vld [vmem:[%s0 + $0x68] sm:$0xff]
    %v44 = vld [vmem:[%s0 + $0x70] sm:$0xff]
    %v45 = vld [vmem:[%s0 + $0x78] sm:$0xff]
    %v46 = vpack.c.bf16 %v31, %v30
    %v47 = vpack.c.bf16 %v33, %v32
    %v48 = vpack.c.bf16 %v35, %v34
    %v49 = vpack.c.bf16 %v37, %v36
    %v50 = vpack.c.bf16 %v39, %v38
    %v51 = vpack.c.bf16 %v41, %v40
    %v52 = vpack.c.bf16 %v43, %v42
    %v53 = vpack.c.bf16 %v45, %v44
    %v54 = vld [vmem:[%s1] sm:$0xf]
    %v55 = vld [vmem:[%s1 + $0x4] sm:$0xf]
    %v56 = vld [vmem:[%s1 + $0x8] sm:$0xf]
    %v57 = vld [vmem:[%s1 + $0xc] sm:$0xf]
    %v58 = vld [vmem:[%s1 + $0x10] sm:$0xf]
    %v59 = vld [vmem:[%s1 + $0x14] sm:$0xf]
    %v60 = vld [vmem:[%s1 + $0x18] sm:$0xf]
    %v61 = vld [vmem:[%s1 + $0x1c] sm:$0xf]
    %v62 = vld [vmem:[%s2] sm:$0xff]
    %v63 = vld [vmem:[%s2 + $0x8] sm:$0xff]
    %v64 = vld [vmem:[%s2 + $0x10] sm:$0xff]
    %v65 = vld [vmem:[%s2 + $0x18] sm:$0xff]
    %v66 = vld [vmem:[%s2 + $0x20] sm:$0xff]
    %v67 = vld [vmem:[%s2 + $0x28] sm:$0xff]
    %v68 = vld [vmem:[%s2 + $0x30] sm:$0xff]
    %v69 = vld [vmem:[%s2 + $0x38] sm:$0xff]
    %71 = vset.pattern.permute.xlu0 0
    %72 = vperm.xlu0 %71, %v62
    %v73 = vpop.permute.xlu0 %72
    %76 = vset.pattern.permute.xlu0 0
    %77 = vperm.xlu0 %76, %v63
    %v78 = vpop.permute.xlu0 %77
    %81 = vset.pattern.permute.xlu0 0
    %82 = vperm.xlu0 %81, %v64
    %v83 = vpop.permute.xlu0 %82
    %86 = vset.pattern.permute.xlu0 0
    %87 = vperm.xlu0 %86, %v65
    %v88 = vpop.permute.xlu0 %87
    %91 = vset.pattern.permute.xlu0 0
    %92 = vperm.xlu0 %91, %v66
    %v93 = vpop.permute.xlu0 %92
    %96 = vset.pattern.permute.xlu0 0
    %97 = vperm.xlu0 %96, %v67
    %v98 = vpop.permute.xlu0 %97
    %101 = vset.pattern.permute.xlu0 0
    %102 = vperm.xlu0 %101, %v68
    %v103 = vpop.permute.xlu0 %102
    %106 = vset.pattern.permute.xlu0 0
    %107 = vperm.xlu0 %106, %v69
    %v108 = vpop.permute.xlu0 %107
    %v118 = vunpack.c.l.b16 %v54
    %v119 = vunpack.c.l.b16 %v55
    %v120 = vunpack.c.l.b16 %v56
    %v121 = vunpack.c.l.b16 %v57
    %v122 = vunpack.c.l.b16 %v58
    %v123 = vunpack.c.l.b16 %v59
    %v124 = vunpack.c.l.b16 %v60
    %v125 = vunpack.c.l.b16 %v61
    %v126 = vpack.c.b16 %v119, %v118
    %v127 = vpack.c.b16 %v121, %v120
    %v128 = vpack.c.b16 %v123, %v122
    %v129 = vpack.c.b16 %v125, %v124
    %vm130 = vcmask 130048
    %v132 = vsel %vm130, %v126, 0
    %v135 = vsel %vm130, %v127, 0
    %v138 = vsel %vm130, %v128, 0
    %v141 = vsel %vm130, %v129, 0
    %v144 = vsel %vm130, %v46, 0
    %v147 = vsel %vm130, %v47, 0
    %v150 = vsel %vm130, %v48, 0
    %v153 = vsel %vm130, %v49, 0
    %v156 = vsel %vm130, %v50, 0
    %v159 = vsel %vm130, %v51, 0
    %v162 = vsel %vm130, %v52, 0
    %v165 = vsel %vm130, %v53, 0
    %167 = vmatprep.subr.bf16.mxu0 0
    %168 = vmatpush1.bf16.xpose.msra.mxu0 %v144
    %169 = vmatprep.subr.bf16.mxu0 0
    %170 = vmatpush1.bf16.xpose.msra.mxu0 %v147
    %171 = vmatprep.subr.bf16.mxu0 0
    %172 = vmatpush1.bf16.xpose.msra.mxu0 %v150
    %173 = vmatprep.subr.bf16.mxu0 0
    %174 = vmatpush1.bf16.xpose.msra.mxu0 %v153
    %175 = vmatprep.subr.bf16.mxu0 0
    %176 = vmatpush1.bf16.xpose.msra.mxu0 %v156
    %177 = vmatprep.subr.bf16.mxu0 0
    %178 = vmatpush1.bf16.xpose.msra.mxu0 %v159
    %179 = vmatprep.subr.bf16.mxu0 0
    %180 = vmatpush1.bf16.xpose.msra.mxu0 %v162
    %181 = vmatprep.subr.bf16.mxu0 0
    %182 = vmatpush1.bf16.xpose.msra.mxu0 %v165
    %183 = vmatprep.subr.bf16.mxu0 0
    %184 = vmatpush1.bf16.xpose.msra.mxu0 0
    %185 = vmatprep.subr.bf16.mxu0 0
    %186 = vmatpush1.bf16.xpose.msra.mxu0 0
    %187 = vmatprep.subr.bf16.mxu0 0
    %188 = vmatpush1.bf16.xpose.msra.mxu0 0
    %189 = vmatprep.subr.bf16.mxu0 0
    %190 = vmatpush1.bf16.xpose.msra.mxu0 0
    %191 = vmatprep.subr.bf16.mxu0 0
    %192 = vmatpush1.bf16.xpose.msra.mxu0 0
    %193 = vmatprep.subr.bf16.mxu0 0
    %194 = vmatpush1.bf16.xpose.msra.mxu0 0
    %195 = vmatprep.subr.bf16.mxu0 0
    %196 = vmatpush1.bf16.xpose.msra.mxu0 0
    %197 = vmatprep.subr.bf16.mxu0 0
    %198 = vmatpush1.bf16.xpose.msra.mxu0 0
    %199 = vmatprep.mubr.bf16.mxu0 0
    %200 = vmatmul.mubr.bf16.gmra.mrb[0].mxu0 %v132
    %v201 = vpop.f32.mrb[0].mxu0
    %v202 = vadd.f32 %v73, %v201
    %v203 = vpop.f32.mrb[0].mxu0
    %v204 = vpop.f32.mrb[0].mxu0
    %v205 = vadd.f32 %v78, %v204
    %v206 = vpop.f32.mrb[0].mxu0
    %207 = vmatprep.mubr.bf16.mxu0 0
    %208 = vmatmul.mubr.bf16.gmra.mrb[0].mxu0 %v135
    %v209 = vpop.f32.mrb[0].mxu0
    %v210 = vadd.f32 %v83, %v209
    %v211 = vpop.f32.mrb[0].mxu0
    %v212 = vpop.f32.mrb[0].mxu0
    %v213 = vadd.f32 %v88, %v212
    %v214 = vpop.f32.mrb[0].mxu0
    %215 = vmatprep.mubr.bf16.mxu0 0
    %216 = vmatmul.mubr.bf16.gmra.mrb[0].mxu0 %v138
    %v217 = vpop.f32.mrb[0].mxu0
    %v218 = vadd.f32 %v93, %v217
    %v219 = vpop.f32.mrb[0].mxu0
    %v220 = vpop.f32.mrb[0].mxu0
    %v221 = vadd.f32 %v98, %v220
    %v222 = vpop.f32.mrb[0].mxu0
    %223 = vmatprep.mubr.bf16.mxu0 0
    %224 = vmatmul.mubr.bf16.gmra.mrb[0].mxu0 %v141
    %v225 = vpop.f32.mrb[0].mxu0
    %v226 = vadd.f32 %v103, %v225
    %v227 = vpop.f32.mrb[0].mxu0
    %v228 = vpop.f32.mrb[0].mxu0
    %v229 = vadd.f32 %v108, %v228
    %v230 = vpop.f32.mrb[0].mxu0
    %231 = vdwg.mxu0
    %v232 = vmax.f32 %v202, 0.0
    %v233 = vmax.f32 %v205, 0.0
    %v234 = vmax.f32 %v210, 0.0
    %v235 = vmax.f32 %v213, 0.0
    %v236 = vmax.f32 %v218, 0.0
    %v237 = vmax.f32 %v221, 0.0
    %v238 = vmax.f32 %v226, 0.0
    %v239 = vmax.f32 %v229, 0.0
    %v240 = vld [vmem:[%s3] sm:$0xf]
    %v241 = vld [vmem:[%s3 + $0x4] sm:$0xf]
    %v242 = vld [vmem:[%s3 + $0x8] sm:$0xf]
    %v243 = vld [vmem:[%s3 + $0xc] sm:$0xf]
    %v244 = vpack.c.bf16 %v233, %v232
    %v245 = vpack.c.bf16 %v235, %v234
    %v246 = vpack.c.bf16 %v237, %v236
    %v247 = vpack.c.bf16 %v239, %v238
    %v248 = vld [vmem:[%s4] sm:$0xff]
    %v249 = vld [vmem:[%s4 + $0x8] sm:$0xff]
    %v250 = vld [vmem:[%s4 + $0x10] sm:$0xff]
    %v251 = vld [vmem:[%s4 + $0x18] sm:$0xff]
    %253 = vset.pattern.permute.xlu0 0
    %254 = vperm.xlu0 %253, %v248
    %v255 = vpop.permute.xlu0 %254
    %258 = vset.pattern.permute.xlu0 0
    %259 = vperm.xlu0 %258, %v249
    %v260 = vpop.permute.xlu0 %259
    %263 = vset.pattern.permute.xlu0 0
    %264 = vperm.xlu0 %263, %v250
    %v265 = vpop.permute.xlu0 %264
    %268 = vset.pattern.permute.xlu0 0
    %269 = vperm.xlu0 %268, %v251
    %v270 = vpop.permute.xlu0 %269
    %v276 = vunpack.c.l.b16 %v240
    %v277 = vunpack.c.l.b16 %v241
    %v278 = vunpack.c.l.b16 %v242
    %v279 = vunpack.c.l.b16 %v243
    %v280 = vpack.c.b16 %v277, %v276
    %v281 = vpack.c.b16 %v279, %v278
    %vm282 = vcmask 523264
    %v284 = vsel %vm282, %v280, 0
    %v287 = vsel %vm282, %v281, 0
    %289 = vmatprep.subr.bf16.mxu0 0
    %290 = vmatpush1.bf16.msra.mxu0 %v244
    %291 = vmatprep.subr.bf16.mxu0 0
    %292 = vmatpush1.bf16.msra.mxu0 %v245
    %293 = vmatprep.subr.bf16.mxu0 0
    %294 = vmatpush1.bf16.msra.mxu0 %v246
    %295 = vmatprep.subr.bf16.mxu0 0
    %296 = vmatpush1.bf16.msra.mxu0 %v247
    %297 = vmatprep.subr.bf16.mxu0 0
    %298 = vmatpush1.bf16.msra.mxu0 0
    %299 = vmatprep.subr.bf16.mxu0 0
    %300 = vmatpush1.bf16.msra.mxu0 0
    %301 = vmatprep.subr.bf16.mxu0 0
    %302 = vmatpush1.bf16.msra.mxu0 0
    %303 = vmatprep.subr.bf16.mxu0 0
    %304 = vmatpush1.bf16.msra.mxu0 0
    %305 = vmatprep.subr.bf16.mxu0 0
    %306 = vmatpush1.bf16.msra.mxu0 0
    %307 = vmatprep.subr.bf16.mxu0 0
    %308 = vmatpush1.bf16.msra.mxu0 0
    %309 = vmatprep.subr.bf16.mxu0 0
    %310 = vmatpush1.bf16.msra.mxu0 0
    %311 = vmatprep.subr.bf16.mxu0 0
    %312 = vmatpush1.bf16.msra.mxu0 0
    %313 = vmatprep.subr.bf16.mxu0 0
    %314 = vmatpush1.bf16.msra.mxu0 0
    %315 = vmatprep.subr.bf16.mxu0 0
    %316 = vmatpush1.bf16.msra.mxu0 0
    %317 = vmatprep.subr.bf16.mxu0 0
    %318 = vmatpush1.bf16.msra.mxu0 0
    %319 = vmatprep.subr.bf16.mxu0 0
    %320 = vmatpush1.bf16.msra.mxu0 0
    %321 = vmatprep.mubr.bf16.mxu0 0
    %322 = vmatmul.mubr.bf16.gmra.mrb[0].mxu0 %v284
    %v323 = vpop.f32.mrb[0].mxu0
    %v324 = vadd.f32 %v255, %v323
    %v325 = vpop.f32.mrb[0].mxu0
    %v326 = vpop.f32.mrb[0].mxu0
    %v327 = vadd.f32 %v260, %v326
    %v328 = vpop.f32.mrb[0].mxu0
    %329 = vmatprep.mubr.bf16.mxu0 0
    %330 = vmatmul.mubr.bf16.gmra.mrb[0].mxu0 %v287
    %v331 = vpop.f32.mrb[0].mxu0
    %v332 = vadd.f32 %v265, %v331
    %v333 = vpop.f32.mrb[0].mxu0
    %v334 = vpop.f32.mrb[0].mxu0
    %v335 = vadd.f32 %v270, %v334
    %v336 = vpop.f32.mrb[0].mxu0
    %337 = vdwg.mxu0
    %v338 = vmax.f32 %v324, 0.0
    %v339 = vmax.f32 %v327, 0.0
    %v340 = vmax.f32 %v332, 0.0
    %v341 = vmax.f32 %v335, 0.0
    %v342 = vld [vmem:[%s5] sm:$0xff]
    %v343 = vld [vmem:[%s5 + $0x8] sm:$0xff]
    %v344 = vld [vmem:[%s5 + $0x10] sm:$0xff]
    %v345 = vld [vmem:[%s5 + $0x18] sm:$0xff]
    %347 = vset.pattern.permute.xlu0 0
    %348 = vperm.xlu0 %347, %v342
    %v349 = vpop.permute.xlu0 %348
    %352 = vset.pattern.permute.xlu0 0
    %353 = vperm.xlu0 %352, %v343
    %v354 = vpop.permute.xlu0 %353
    %357 = vset.pattern.permute.xlu0 0
    %358 = vperm.xlu0 %357, %v344
    %v359 = vpop.permute.xlu0 %358
    %362 = vset.pattern.permute.xlu0 0
    %363 = vperm.xlu0 %362, %v345
    %v364 = vpop.permute.xlu0 %363
    %v366 = vmul.f32 %v338, %v349
    %v367 = vmul.f32 %v339, %v354
    %v368 = vmul.f32 %v340, %v359
    %v369 = vmul.f32 %v341, %v364
    %v370 = vadd.f32 %v366, %v367
    %v371 = vadd.f32 %v370, %v368
    %v372 = vadd.f32 %v371, %v369
    %v373 = vrot.slane %v372, 4
    %v374 = vadd.f32 %v372, %v373
    %v375 = vrot.slane %v374, 2
    %v376 = vadd.f32 %v374, %v375
    %v377 = vrot.slane %v376, 1
    %v378 = vadd.f32 %v376, %v377
    %v379 = vld [vmem:[#allocation2] sm:$0x1]
    %381 = vset.pattern.permute.xlu0 0
    %382 = vperm.xlu0 %381, %v379
    %v383 = vpop.permute.xlu0 %382
    %v385 = vlaneseq
    %v386 = vshrl.u32 %v385, 7
    %v387 = vsub.s32 0, %v386
    %v388 = vrot.slane %v383, %v387
    %v389 = vadd.f32 %v378, %v388
    %v390 = vsub.f32 0.0, %v389
    %v391 = vmul.f32 %v390, 1.442695
    %v392 = vpow.pop %v391
    %v393 = vadd.f32 %v392, 1.0
    %v394 = vrcp.pop %v393
    %395 = vst [vmem:[#allocation3] sm:$0x1] %v394
    // Predicated region
    $region30: #{tpu_custom_call.1} parent=1 // pred_check
      _
    $region31: #{tpu_custom_call.1} parent=1 // pred_check_branch
      %397 = sbr.rel (0) target = $region33
    $region32: #{tpu_custom_call.1} parent=1 // pred_region
      %s399 = ssub.s32 16, 16
      %400 = vsyncadd [#allocation4], %s399
      %s402 = sshll.u32 [#allocation3], 4
      %s403 = int_to_ptr.vmem [resolvable:$true] %s402
      %405 = dma.vmem_to_hbm [thread:$0]  %s403, 16, %s7, [#allocation4]
    $region33: #{tpu_custom_call.1} parent=1 // pred_fallthru
      _
    // Predicated region
    $region34: #{tpu_custom_call.1} parent=1 // pred_check
      _
    $region35: #{tpu_custom_call.1} parent=1 // pred_check_branch
      %407 = sbr.rel (0) target = $region37
    $region36: #{tpu_custom_call.1} parent=1 // pred_region
      %408 = dma.done [#allocation4], 16
    $region37: #{tpu_custom_call.1} parent=1 // pred_fallthru
      _
    %409 = vsyncpa [#allocation4], 1

</llo_original>
